<compile_context>
chip_gen: v7x
topology: tpu7x:2x2x1
jax: 0.10.0
libtpu: 0.0.40
codegen_flags: <defaults>
</compile_context>

<pallas_src>
import functools
import math

import jax
import jax.numpy as jnp
from jax import lax
from jax.experimental import pallas as pl
from jax.experimental.pallas import tpu as pltpu

# ---------------- f0 <-> coarse constants (standard diff-svc values) ----------
# Plain Python floats (math.log) -> no captured traced constants in the kernel.
F0_BIN = 256
F0_MIN = 50.0
F0_MAX = 1100.0
F0_MEL_MIN = 1127.0 * math.log(1.0 + F0_MIN / 700.0)
F0_MEL_MAX = 1127.0 * math.log(1.0 + F0_MAX / 700.0)
LN2 = math.log(2.0)

P_TABLE = 256  # pitch is clipped to [1, 255] -> only 256 table rows reachable


# ------------------------------- Pallas kernel --------------------------------
def svc_encoder_kernel(
    hub_ref,      # (1, T_src, H) f32   full hubert slab for this batch element
    m2p_ref,      # (1, 1, TT)   int32  lane-dense mel2ph
    f0_ref,       # (1, 1, TT)   f32    normalized (log2) f0
    uv_ref,       # (1, 1, TT)   f32    unvoiced flag (1.0 = unvoiced)
    spk_ref,      # (1, 1, H)    f32    speaker embedding row
    table_ref,    # (256, H)     f32    pitch embedding table (rows 0..255)
    dec_ref,      # out (1, TT, H) f32   decoder_inp
    f0d_ref,      # out (1, 1, TT) f32   denormalized f0
    pitch_ref,    # out (1, 1, TT) int32 coarse pitch
):
  # ---- lane-dense per-frame scalar math (VPU + EUP) ----
  m_lane = m2p_ref[0]                    # (1, TT) int32
  f0 = f0_ref[0]                         # (1, TT)
  uv = uv_ref[0]                         # (1, TT)

  # denorm_f0 (pitch_norm='log', use_uv=True) with pitch_padding (mel2ph == 0)
  voiced = jnp.logical_and(uv <= 0.0, m_lane > 0)
  f0_denorm = jnp.where(voiced, jnp.exp(f0 * LN2), 0.0)   # exp(x*ln2) == 2**x
  f0d_ref[0] = f0_denorm

  # f0_to_coarse
  f0_mel = 1127.0 * jnp.log(1.0 + f0_denorm / 700.0)
  scale = (F0_BIN - 2) / (F0_MEL_MAX - F0_MEL_MIN)
  f0_mel = jnp.where(f0_mel > 0.0, (f0_mel - F0_MEL_MIN) * scale + 1.0, f0_mel)
  f0_mel = jnp.clip(f0_mel, 1.0, float(F0_BIN - 1))
  pitch = jnp.floor(f0_mel + 0.5).astype(jnp.int32)       # (1, TT), in [1, 255]
  pitch_ref[0] = pitch

  # ---- two tiny XLU transposes: lane row-vectors -> column vectors ----
  m_col = jnp.transpose(m_lane)          # (TT, 1) int32
  pitch_col = jnp.transpose(pitch)       # (TT, 1) int32

  hub = hub_ref[0]                       # (T_src, H)
  TT = m_col.shape[0]
  T_src = hub.shape[0]
  P = table_ref.shape[0]

  # ---- hubert gather as a one-hot MXU matmul against the slab ----
  # torch.gather over F.pad(hubert, [0,0,1,0]): index m selects hubert[m-1];
  # m == 0 selects the zero pad row == an all-zero one-hot row here (exact).
  s_iota = lax.broadcasted_iota(jnp.int32, (TT, T_src), 1)
  gat_onehot = (s_iota == (m_col - 1)).astype(jnp.float32)           # (TT, T_src)
  gathered = jnp.dot(gat_onehot, hub, preferred_element_type=jnp.float32)

  # ---- pitch_embed(pitch): (TT, P) one-hot @ (P, H) table on the MXU ----
  p_iota = lax.broadcasted_iota(jnp.int32, (TT, P), 1)
  pitch_onehot = (p_iota == pitch_col).astype(jnp.float32)           # (TT, P)
  pitch_emb = jnp.dot(pitch_onehot, table_ref[...],
                      preferred_element_type=jnp.float32)            # (TT, H)

  # ---- decoder_inp = (gathered + pitch_emb + spk_embed) * tgt_nonpadding ----
  mask_col = (m_col > 0).astype(jnp.float32)                         # (TT, 1)
  spk = spk_ref[0]                                                   # (1, H)
  dec_ref[0] = (gathered + pitch_emb + spk) * mask_col


# ------------------------------ host-side wrapper ------------------------------
@functools.partial(jax.jit, static_argnames=("tile_t",))
def svc_encoder_forward(hubert, mel2ph, f0, uv, spk_id, pitch_table, spk_table,
                        *, tile_t=None):
  """hubert: (B, T_src, H) f32; mel2ph: (B, T_mel) int in [0, T_src];
     f0/uv: (B, T_mel) f32; spk_id: (B,) int32."""
  B, T_src, H = hubert.shape
  T_mel = mel2ph.shape[1]
  P = pitch_table.shape[0]

  if tile_t is None:
    tile_t = T_mel if T_mel <= 512 else 512
  if T_mel % tile_t != 0:
    # TODO(synk): handle a ragged tail tile (pad T_mel host-side if needed).
    raise ValueError("T_mel must be a multiple of tile_t")

  # pitch is clipped to [1, 255]: only the first 256 table rows are reachable.
  if P >= P_TABLE:
    table_use = pitch_table[:P_TABLE]
  else:
    table_use = jnp.pad(pitch_table, ((0, P_TABLE - P), (0, 0)))

  mel2ph_i32 = mel2ph.astype(jnp.int32)
  m2p_lane = mel2ph_i32[:, None, :]        # (B, 1, T) lane-dense
  f0_lane = f0[:, None, :]                 # (B, 1, T)
  uv_lane = uv[:, None, :]                 # (B, 1, T)
  spk_embed = jnp.take(spk_table, spk_id, axis=0)[:, None, :]   # (B, 1, H)

  grid = (B, T_mel // tile_t)              # both axes parallel (megacore on v7x)

  dec, f0_denorm, pitch = pl.pallas_call(
      svc_encoder_kernel,
      out_shape=(
          jax.ShapeDtypeStruct((B, T_mel, H), jnp.float32),
          jax.ShapeDtypeStruct((B, 1, T_mel), jnp.float32),
          jax.ShapeDtypeStruct((B, 1, T_mel), jnp.int32),
      ),
      grid_spec=pltpu.PrefetchScalarGridSpec(
          num_scalar_prefetch=0,
          grid=grid,
          in_specs=[
              # Full hubert slab for batch b; constant over the time axis so it
              # is only re-fetched when b changes.
              pl.BlockSpec((1, T_src, H), lambda b, t: (b, 0, 0)),
              pl.BlockSpec((1, 1, tile_t), lambda b, t: (b, 0, t)),
              pl.BlockSpec((1, 1, tile_t), lambda b, t: (b, 0, t)),
              pl.BlockSpec((1, 1, tile_t), lambda b, t: (b, 0, t)),
              pl.BlockSpec((1, 1, H), lambda b, t: (b, 0, 0)),
              # Constant block index -> the table is not re-fetched per step.
              pl.BlockSpec((P_TABLE, H), lambda b, t: (0, 0)),
          ],
          out_specs=[
              pl.BlockSpec((1, tile_t, H), lambda b, t: (b, t, 0)),
              pl.BlockSpec((1, 1, tile_t), lambda b, t: (b, 0, t)),
              pl.BlockSpec((1, 1, tile_t), lambda b, t: (b, 0, t)),
          ],
      ),
      compiler_params=pltpu.CompilerParams(
          dimension_semantics=("parallel", "parallel"),
          vmem_limit_bytes=32 * 1024 * 1024),
  )(hubert, m2p_lane, f0_lane, uv_lane, spk_embed, table_use)

  return {
      "mel2ph": mel2ph,
      "f0_denorm": f0_denorm[:, 0, :],        # (B, T_mel)
      "pitch_pred": pitch[:, 0, :, None],     # (B, T_mel, 1) == pitch.unsqueeze(-1)
      "decoder_inp": dec,                     # (B, T_mel, H)
  }


# -------------------------------- pure-JAX reference ---------------------------
def svc_encoder_reference(hubert, mel2ph, f0, uv, spk_id, pitch_table, spk_table):
  """Faithful pad+gather formulation of the PyTorch forward."""
  enc_pad = jnp.pad(hubert, ((0, 0), (1, 0), (0, 0)))
  idx = jnp.broadcast_to(mel2ph[..., None].astype(jnp.int32),
                         mel2ph.shape + (hubert.shape[-1],))
  gathered = jnp.take_along_axis(enc_pad, idx, axis=1)
  f0_denorm = jnp.exp(f0 * LN2)                       # 2 ** f0
  f0_denorm = jnp.where(uv > 0.0, 0.0, f0_denorm)
  f0_denorm = jnp.where(mel2ph == 0, 0.0, f0_denorm)
  f0_mel = 1127.0 * jnp.log(1.0 + f0_denorm / 700.0)
  scale = (F0_BIN - 2) / (F0_MEL_MAX - F0_MEL_MIN)
  f0_mel = jnp.where(f0_mel > 0.0, (f0_mel - F0_MEL_MIN) * scale + 1.0, f0_mel)
  f0_mel = jnp.clip(f0_mel, 1.0, float(F0_BIN - 1))
  pitch = jnp.floor(f0_mel + 0.5).astype(jnp.int32)
  pitch_emb = jnp.take(pitch_table, pitch, axis=0)
  spk_embed = jnp.take(spk_table, spk_id, axis=0)[:, None, :]
  tgt = (mel2ph > 0).astype(jnp.float32)[..., None]
  dec = (gathered + pitch_emb + spk_embed) * tgt
  return f0_denorm, pitch[..., None], dec


# ------------------------------------ main -------------------------------------
if __name__ == "__main__":
  B, T_src, T_mel, H, NUM_SPK = 2, 8, 16, 128, 4   # H lane-aligned (128)

  key = jax.random.PRNGKey(0)
  k_hub, k_m2p, k_f0, k_uv, k_spk, k_pt, k_st = jax.random.split(key, 7)

  hubert = jax.random.normal(k_hub, (B, T_src, H), dtype=jnp.float32)
  # mel2ph in [0, T_src]; 0 marks padding frames
  mel2ph = jax.random.randint(k_m2p, (B, T_mel), 0, T_src + 1, dtype=jnp.int32)
  mel2ph = mel2ph.at[:, -2:].set(0)                       # explicit padding tail
  # normalized (log2) f0 around ~200 Hz
  f0 = 7.6 + 0.5 * jax.random.normal(k_f0, (B, T_mel), dtype=jnp.float32)
  uv = (jax.random.uniform(k_uv, (B, T_mel)) < 0.25).astype(jnp.float32)
  spk_id = jax.random.randint(k_spk, (B,), 0, NUM_SPK, dtype=jnp.int32)

  # parameters (deterministic): Embedding(300, H) with padding_idx 0, Embedding(num_spk, H)
  pitch_table = 0.02 * jax.random.normal(k_pt, (300, H), dtype=jnp.float32)
  pitch_table = pitch_table.at[0].set(0.0)
  spk_table = 0.02 * jax.random.normal(k_st, (NUM_SPK, H), dtype=jnp.float32)

  ret = svc_encoder_forward(hubert, mel2ph, f0, uv, spk_id, pitch_table, spk_table)
  jax.block_until_ready(ret["decoder_inp"])

  f0d_ref, pitch_ref_out, dec_ref_out = svc_encoder_reference(
      hubert, mel2ph, f0, uv, spk_id, pitch_table, spk_table)

  assert jnp.allclose(ret["f0_denorm"], f0d_ref, atol=1e-4, rtol=1e-4)
  assert jnp.array_equal(ret["pitch_pred"], pitch_ref_out)
  assert jnp.allclose(ret["decoder_inp"], dec_ref_out, atol=1e-4, rtol=1e-4)

  print("KERNEL_OK")
</pallas_src>

<mosaic_0001>
module attributes {stable_mosaic.version = 11 : i64} {
  func.func @svc_encoder_kernel(%arg0: i32, %arg1: i32, %arg2: memref<1x8x128xf32, #tpu.memory_space<vmem>>, %arg3: memref<1x1x16xi32, #tpu.memory_space<vmem>>, %arg4: memref<1x1x16xf32, #tpu.memory_space<vmem>>, %arg5: memref<1x1x16xf32, #tpu.memory_space<vmem>>, %arg6: memref<1x1x128xf32, #tpu.memory_space<vmem>>, %arg7: memref<256x128xf32, #tpu.memory_space<vmem>>, %arg8: memref<1x16x128xf32, #tpu.memory_space<vmem>>, %arg9: memref<1x1x16xf32, #tpu.memory_space<vmem>>, %arg10: memref<1x1x16xi32, #tpu.memory_space<vmem>>) attributes {dimension_semantics = [#tpu.dimension_semantics<parallel>, #tpu.dimension_semantics<parallel>], iteration_bounds = array<i64: 2, 1>, scalar_prefetch = 0 : i64, scratch_operands = 0 : i64, tpu.core_type = #tpu.core_type<tc>, window_params = [{transform_indices = @transform_0, window_bounds = array<i64: 1, 8, 128>}, {transform_indices = @transform_1, window_bounds = array<i64: 1, 1, 16>}, {transform_indices = @transform_2, window_bounds = array<i64: 1, 1, 16>}, {transform_indices = @transform_3, window_bounds = array<i64: 1, 1, 16>}, {transform_indices = @transform_4, window_bounds = array<i64: 1, 1, 128>}, {pipeline_mode = #tpu.pipeline_mode<synchronous>, transform_indices = @transform_5, window_bounds = array<i64: 256, 128>}, {transform_indices = @transform_6, window_bounds = array<i64: 1, 16, 128>}, {transform_indices = @transform_7, window_bounds = array<i64: 1, 1, 16>}, {transform_indices = @transform_8, window_bounds = array<i64: 1, 1, 16>}]} {
    %c0 = arith.constant 0 : index
    %c0_0 = arith.constant 0 : index
    %c0_1 = arith.constant 0 : index
    %0 = vector.load %arg3[%c0, %c0_0, %c0_1] : memref<1x1x16xi32, #tpu.memory_space<vmem>>, vector<1x1x16xi32>
    %1 = vector.shape_cast %0 : vector<1x1x16xi32> to vector<1x16xi32>
    %c0_2 = arith.constant 0 : index
    %c0_3 = arith.constant 0 : index
    %c0_4 = arith.constant 0 : index
    %2 = vector.load %arg4[%c0_2, %c0_3, %c0_4] : memref<1x1x16xf32, #tpu.memory_space<vmem>>, vector<1x1x16xf32>
    %3 = vector.shape_cast %2 : vector<1x1x16xf32> to vector<1x16xf32>
    %c0_5 = arith.constant 0 : index
    %c0_6 = arith.constant 0 : index
    %c0_7 = arith.constant 0 : index
    %4 = vector.load %arg5[%c0_5, %c0_6, %c0_7] : memref<1x1x16xf32, #tpu.memory_space<vmem>>, vector<1x1x16xf32>
    %5 = vector.shape_cast %4 : vector<1x1x16xf32> to vector<1x16xf32>
    %cst = arith.constant 0.000000e+00 : f32
    %6 = vector.broadcast %cst : f32 to vector<1x16xf32>
    %7 = arith.cmpf ole, %5, %6 : vector<1x16xf32>
    %c0_i32 = arith.constant 0 : i32
    %8 = vector.broadcast %c0_i32 : i32 to vector<1x16xi32>
    %9 = arith.cmpi sgt, %1, %8 : vector<1x16xi32>
    %10 = arith.andi %7, %9 : vector<1x16xi1>
    %cst_8 = arith.constant 0.693147182 : f32
    %11 = vector.broadcast %cst_8 : f32 to vector<1x16xf32>
    %12 = arith.mulf %3, %11 : vector<1x16xf32>
    %13 = math.exp %12 : vector<1x16xf32>
    %cst_9 = arith.constant 0.000000e+00 : f32
    %14 = vector.broadcast %cst_9 : f32 to vector<1x16xf32>
    %15 = arith.select %10, %13, %14 : vector<1x16xi1>, vector<1x16xf32>
    %c0_10 = arith.constant 0 : index
    %c0_11 = arith.constant 0 : index
    %c0_12 = arith.constant 0 : index
    %16 = vector.load %arg9[%c0_10, %c0_11, %c0_12] : memref<1x1x16xf32, #tpu.memory_space<vmem>>, vector<1x1x16xf32>
    %17 = vector.shape_cast %16 : vector<1x1x16xf32> to vector<1x16xf32>
    %18 = vector.shape_cast %15 : vector<1x16xf32> to vector<1x1x16xf32>
    tpu.vector_store %arg9[%c0_10, %c0_11, %c0_12], %18 {strides = array<i32>} : memref<1x1x16xf32, #tpu.memory_space<vmem>>, vector<1x1x16xf32>,
    %cst_13 = arith.constant 7.000000e+02 : f32
    %19 = vector.broadcast %cst_13 : f32 to vector<1x16xf32>
    %20 = arith.divf %15, %19 : vector<1x16xf32>
    %cst_14 = arith.constant 1.000000e+00 : f32
    %21 = vector.broadcast %cst_14 : f32 to vector<1x16xf32>
    %22 = arith.addf %21, %20 : vector<1x16xf32>
    %23 = math.log %22 : vector<1x16xf32>
    %cst_15 = arith.constant 1.127000e+03 : f32
    %24 = vector.broadcast %cst_15 : f32 to vector<1x16xf32>
    %25 = arith.mulf %24, %23 : vector<1x16xf32>
    %cst_16 = arith.constant 0.000000e+00 : f32
    %26 = vector.broadcast %cst_16 : f32 to vector<1x16xf32>
    %27 = arith.cmpf ogt, %25, %26 : vector<1x16xf32>
    %cst_17 = arith.constant 77.7549667 : f32
    %28 = vector.broadcast %cst_17 : f32 to vector<1x16xf32>
    %29 = arith.subf %25, %28 : vector<1x16xf32>
    %cst_18 = arith.constant 0.257435918 : f32
    %30 = vector.broadcast %cst_18 : f32 to vector<1x16xf32>
    %31 = arith.mulf %29, %30 : vector<1x16xf32>
    %cst_19 = arith.constant 1.000000e+00 : f32
    %32 = vector.broadcast %cst_19 : f32 to vector<1x16xf32>
    %33 = arith.addf %31, %32 : vector<1x16xf32>
    %34 = arith.select %27, %33, %25 : vector<1x16xi1>, vector<1x16xf32>
    %cst_20 = arith.constant 1.000000e+00 : f32
    %cst_21 = arith.constant 2.550000e+02 : f32
    %35 = vector.broadcast %cst_20 : f32 to vector<1x16xf32>
    %36 = arith.maximumf %35, %34 : vector<1x16xf32>
    %37 = vector.broadcast %cst_21 : f32 to vector<1x16xf32>
    %38 = arith.minimumf %37, %36 : vector<1x16xf32>
    %cst_22 = arith.constant 5.000000e-01 : f32
    %39 = vector.broadcast %cst_22 : f32 to vector<1x16xf32>
    %40 = arith.addf %38, %39 : vector<1x16xf32>
    %41 = math.floor %40 : vector<1x16xf32>
    %42 = arith.fptosi %41 : vector<1x16xf32> to vector<1x16xi32>
    %c0_23 = arith.constant 0 : index
    %c0_24 = arith.constant 0 : index
    %c0_25 = arith.constant 0 : index
    %43 = vector.load %arg10[%c0_23, %c0_24, %c0_25] : memref<1x1x16xi32, #tpu.memory_space<vmem>>, vector<1x1x16xi32>
    %44 = vector.shape_cast %43 : vector<1x1x16xi32> to vector<1x16xi32>
    %45 = vector.shape_cast %42 : vector<1x16xi32> to vector<1x1x16xi32>
    tpu.vector_store %arg10[%c0_23, %c0_24, %c0_25], %45 {strides = array<i32>} : memref<1x1x16xi32, #tpu.memory_space<vmem>>, vector<1x1x16xi32>,
    %46 = tpu.transpose %1, [1, 0] : vector<1x16xi32> -> vector<16x1xi32>
    %47 = tpu.transpose %42, [1, 0] : vector<1x16xi32> -> vector<16x1xi32>
    %c0_26 = arith.constant 0 : index
    %c0_27 = arith.constant 0 : index
    %c0_28 = arith.constant 0 : index
    %48 = vector.load %arg2[%c0_26, %c0_27, %c0_28] : memref<1x8x128xf32, #tpu.memory_space<vmem>>, vector<1x8x128xf32>
    %49 = vector.shape_cast %48 : vector<1x8x128xf32> to vector<8x128xf32>
    %50 = tpu.iota {dimensions = array<i32: 1>} : vector<16x8xi32>
    %c1_i32 = arith.constant 1 : i32
    %51 = vector.broadcast %c1_i32 : i32 to vector<16x1xi32>
    %52 = arith.subi %46, %51 : vector<16x1xi32>
    %53 = vector.broadcast %52 : vector<16x1xi32> to vector<16x8xi32>
    %54 = arith.cmpi eq, %50, %53 : vector<16x8xi32>
    %55 = arith.extui %54 : vector<16x8xi1> to vector<16x8xi32>
    %56 = arith.sitofp %55 : vector<16x8xi32> to vector<16x8xf32>
    %cst_29 = arith.constant dense<0.000000e+00> : vector<16x128xf32>
    %57 = tpu.matmul %56, %49, %cst_29 {dimension_numbers = #tpu.dot_dimension_numbers<[1], [0], [0], [1], [0, 0, 1, 1], [], []>} : vector<16x8xf32>, vector<8x128xf32>, vector<16x128xf32> -> vector<16x128xf32>
    %58 = tpu.iota {dimensions = array<i32: 1>} : vector<16x256xi32>
    %59 = vector.broadcast %47 : vector<16x1xi32> to vector<16x256xi32>
    %60 = arith.cmpi eq, %58, %59 : vector<16x256xi32>
    %61 = arith.extui %60 : vector<16x256xi1> to vector<16x256xi32>
    %62 = arith.sitofp %61 : vector<16x256xi32> to vector<16x256xf32>
    %c0_30 = arith.constant 0 : index
    %c0_31 = arith.constant 0 : index
    %63 = vector.load %arg7[%c0_30, %c0_31] : memref<256x128xf32, #tpu.memory_space<vmem>>, vector<256x128xf32>
    %cst_32 = arith.constant dense<0.000000e+00> : vector<16x128xf32>
    %64 = tpu.matmul %62, %63, %cst_32 {dimension_numbers = #tpu.dot_dimension_numbers<[1], [0], [0], [1], [0, 0, 1, 1], [], []>} : vector<16x256xf32>, vector<256x128xf32>, vector<16x128xf32> -> vector<16x128xf32>
    %c0_i32_33 = arith.constant 0 : i32
    %65 = vector.broadcast %c0_i32_33 : i32 to vector<16x1xi32>
    %66 = arith.cmpi sgt, %46, %65 : vector<16x1xi32>
    %67 = arith.extui %66 : vector<16x1xi1> to vector<16x1xi32>
    %68 = arith.sitofp %67 : vector<16x1xi32> to vector<16x1xf32>
    %c0_34 = arith.constant 0 : index
    %c0_35 = arith.constant 0 : index
    %c0_36 = arith.constant 0 : index
    %69 = vector.load %arg6[%c0_34, %c0_35, %c0_36] : memref<1x1x128xf32, #tpu.memory_space<vmem>>, vector<1x1x128xf32>
    %70 = vector.shape_cast %69 : vector<1x1x128xf32> to vector<1x128xf32>
    %71 = arith.addf %57, %64 : vector<16x128xf32>
    %72 = vector.broadcast %70 : vector<1x128xf32> to vector<16x128xf32>
    %73 = arith.addf %71, %72 : vector<16x128xf32>
    %74 = vector.broadcast %68 : vector<16x1xf32> to vector<16x128xf32>
    %75 = arith.mulf %73, %74 : vector<16x128xf32>
    %c0_37 = arith.constant 0 : index
    %c0_38 = arith.constant 0 : index
    %c0_39 = arith.constant 0 : index
    %76 = vector.load %arg8[%c0_37, %c0_38, %c0_39] : memref<1x16x128xf32, #tpu.memory_space<vmem>>, vector<1x16x128xf32>
    %77 = vector.shape_cast %76 : vector<1x16x128xf32> to vector<16x128xf32>
    %78 = vector.shape_cast %75 : vector<16x128xf32> to vector<1x16x128xf32>
    tpu.vector_store %arg8[%c0_37, %c0_38, %c0_39], %78 {strides = array<i32>} : memref<1x16x128xf32, #tpu.memory_space<vmem>>, vector<1x16x128xf32>,
    return
  }
  func.func @transform_0(%arg0: i32, %arg1: i32) -> (i32, i32, i32) {
    %c0_i32 = arith.constant 0 : i32
    %c0_i32_0 = arith.constant 0 : i32
    %c0_i32_1 = arith.constant 0 : i32
    return %arg0, %c0_i32, %c0_i32_0 : i32, i32, i32
  }
  func.func @transform_1(%arg0: i32, %arg1: i32) -> (i32, i32, i32) {
    %c0_i32 = arith.constant 0 : i32
    %c0_i32_0 = arith.constant 0 : i32
    return %arg0, %c0_i32, %arg1 : i32, i32, i32
  }
  func.func @transform_2(%arg0: i32, %arg1: i32) -> (i32, i32, i32) {
    %c0_i32 = arith.constant 0 : i32
    %c0_i32_0 = arith.constant 0 : i32
    return %arg0, %c0_i32, %arg1 : i32, i32, i32
  }
  func.func @transform_3(%arg0: i32, %arg1: i32) -> (i32, i32, i32) {
    %c0_i32 = arith.constant 0 : i32
    %c0_i32_0 = arith.constant 0 : i32
    return %arg0, %c0_i32, %arg1 : i32, i32, i32
  }
  func.func @transform_4(%arg0: i32, %arg1: i32) -> (i32, i32, i32) {
    %c0_i32 = arith.constant 0 : i32
    %c0_i32_0 = arith.constant 0 : i32
    %c0_i32_1 = arith.constant 0 : i32
    return %arg0, %c0_i32, %c0_i32_0 : i32, i32, i32
  }
  func.func @transform_5(%arg0: i32, %arg1: i32) -> (i32, i32) {
    %c0_i32 = arith.constant 0 : i32
    %c0_i32_0 = arith.constant 0 : i32
    %c0_i32_1 = arith.constant 0 : i32
    return %c0_i32, %c0_i32_0 : i32, i32
  }
  func.func @transform_6(%arg0: i32, %arg1: i32) -> (i32, i32, i32) {
    %c0_i32 = arith.constant 0 : i32
    %c0_i32_0 = arith.constant 0 : i32
    return %arg0, %arg1, %c0_i32 : i32, i32, i32
  }
  func.func @transform_7(%arg0: i32, %arg1: i32) -> (i32, i32, i32) {
    %c0_i32 = arith.constant 0 : i32
    %c0_i32_0 = arith.constant 0 : i32
    return %arg0, %c0_i32, %arg1 : i32, i32, i32
  }
  func.func @transform_8(%arg0: i32, %arg1: i32) -> (i32, i32, i32) {
    %c0_i32 = arith.constant 0 : i32
    %c0_i32_0 = arith.constant 0 : i32
    return %arg0, %c0_i32, %arg1 : i32, i32, i32
  }
}

</mosaic_0001>

<llo_original>
// kernel: svc_encoder_forward.1
$region0: #{svc_encoder_forward.1}
  #allocation0 [shape = 'u32[]', space=smem, size = 0x4, offset = 0x4, fixed_abs, tag = 'smem constant byte address 0x4 - core index']
  #allocation1 [shape = 'u32[144,128]{1,0:T(1,128)}', space=vmem, size = 0x12000, scoped, tag = 'internal scratch']
  %s0 = inlined_call_operand.vmem [shape: f32[2,8,128], index: 0, kind: input, shape index: {}]
  %s1 = inlined_call_operand.vmem [shape: s32[2,1,16], index: 1, kind: input, shape index: {}]
  %s2 = inlined_call_operand.vmem [shape: f32[2,1,16], index: 2, kind: input, shape index: {}]
  %s3 = inlined_call_operand.vmem [shape: f32[2,1,16], index: 3, kind: input, shape index: {}]
  %s4 = inlined_call_operand.vmem [shape: f32[2,1,128], index: 4, kind: input, shape index: {}]
  %s5 = inlined_call_operand.vmem [shape: f32[256,128], index: 5, kind: input, shape index: {}]
  %s6 = inlined_call_operand.hbm [shape: f32[2,16,128], index: 6, kind: output, shape index: {0}]
  %s7 = inlined_call_operand.hbm [shape: f32[2,1,16], index: 7, kind: output, shape index: {1}]
  %s8 = inlined_call_operand.hbm [shape: s32[2,1,16], index: 8, kind: output, shape index: {2}]
  %9 = xla_tuple %s6, %s7, %s8
  %s10 = sld [smem:[#allocation0]]
  $region73: #{svc_encoder_forward.1} parent=0
    _
  %s12 = ssub.s32 1, %s10
  %s13 = scalar_select 0, %s12, %s10
  $region1: #{svc_encoder_forward.1} parent=0
    #allocation2 [shape = 'u8[16384]{0}', space=vmem, size = 0x4000, scoped, tag = 'output window, operand 0']
    #allocation3 [shape = 's32[2]{0}', space=sflag, size = 0x8, scoped, tag = 'scoped memory for svc_encoder_forward.1']
    #allocation4 [shape = 'u8[1024]{0}', space=vmem, size = 0x400, scoped, tag = 'output window, operand 1']
    #allocation5 [shape = 's32[2]{0}', space=sflag, size = 0x8, scoped, tag = 'scoped memory for svc_encoder_forward.1']
    #allocation6 [shape = 'u8[1024]{0}', space=vmem, size = 0x400, scoped, tag = 'output window, operand 2']
    %14 = vsyncpa [#allocation3], 0
    %s15 = scalar_lea.sflag [#allocation3], 1
    %16 = vsyncpa %s15, 0
    %17 = vsyncpa [#allocation5], 0
    %s18 = scalar_lea.sflag [#allocation5], 1
    %19 = vsyncpa %s18, 0
    loop: start=0, step=1, limit=4
    $region2: #{svc_encoder_forward.1} parent=1 // loop_pre_header
      _
    $region3: #{svc_encoder_forward.1} parent=1 // loop_header
      %s21 = sphi 0, %s25
      %p22 = scmp.ge.s32.totalorder %s21, 4
      %s28 = sphi 0, %s40
      %s29 = sphi 0, %s36
      %s30 = sphi 0, %s28
      %s31 = sphi 0, %s29
      %s32 = sphi 0, %s30
      %s33 = sphi 0, %s31
      %s43 = sphi 0, %s45
      %s46 = sphi 0, %s43
      %s47 = sphi 0, %s46
      %s63 = sphi 0, %s47
      %s71 = sphi 0, %s73
      %s74 = sphi 0, %s71
      %s75 = sphi 0, %s74
      %s91 = sphi 0, %s75
      %s99 = sphi 0, %s101
      %s102 = sphi 0, %s99
      %s103 = sphi 0, %s102
      %s119 = sphi 0, %s103
      %s127 = sphi 0, %s129
      %s130 = sphi 0, %s127
      %s131 = sphi 0, %s130
      %s147 = sphi 0, %s131
      %s153 = sphi 0, %s155
      %s156 = sphi 0, %s153
      %s157 = sphi 0, %s156
      %s173 = sphi 0, %s157
      %s177 = sphi 0, %s177
      %s179 = sphi 0, %s177
      %s180 = sphi 0, %s179
      %s194 = sphi 0, %s180
      %s202 = sphi 0, %s204
      %s205 = sphi 0, %s202
      %s206 = sphi 0, %s205
      %s222 = sphi 0, %s206
      %s230 = sphi 0, %s232
      %s233 = sphi 0, %s230
      %s234 = sphi 0, %s233
      %s250 = sphi 0, %s234
      %s258 = sphi 0, %s260
      %s261 = sphi 0, %s258
      %s262 = sphi 0, %s261
      %s278 = sphi 0, %s262
    $region4: #{svc_encoder_forward.1} parent=1 // loop_header_branch
      %24 = sbr.rel (%p22) target = $region8
    $region5: #{svc_encoder_forward.1} parent=1 // loop_body
      %s26 = ssub.s32 %s21, 1
      %s27 = ssub.s32 %s21, 2
      %s34 = sadd.s32 1, %s29
      %p35 = scmp.ge.s32.totalorder %s34, 1
      %s36 = scalar_select %p35, 0, %s34
      %s37 = sadd.s32 1, %s28
      %s38 = scalar_select %p35, %s37, %s28
      %p39 = scmp.ge.s32.totalorder %s38, 2
      %s40 = scalar_select %p39, 0, %s38
      %s41 = ssub.s32 %s28, %s40
      %p42 = scmp.eq.s32.totalorder %s41, 0
      %s44 = sadd.s32 %s43, 1
      %s45 = scalar_select %p42, %s43, %s44
      %p48 = pneg %p42
      %p49 = scmp.eq.s32.totalorder %s21, 1
      %p50 = por %p48, %p49
      %p51 = scmp.ne.s32.totalorder %s43, %s46
      %p52 = scmp.eq.s32.totalorder %s21, 0
      %p53 = por %p51, %p52
      %p54 = scmp.ne.s32.totalorder %s43, %s46
      %p55 = scmp.eq.s32.totalorder %s26, 1
      %p56 = por %p54, %p55
      %p57 = scmp.ne.s32.totalorder %s46, %s47
      %p58 = scmp.eq.s32.totalorder %s26, 0
      %p59 = por %p57, %p58
      %p60 = scmp.ne.s32.totalorder %s46, %s47
      %p61 = scmp.eq.s32.totalorder %s27, 1
      %p62 = por %p60, %p61
      %p64 = scmp.ne.s32.totalorder %s47, %s63
      %p65 = scmp.eq.s32.totalorder %s27, 0
      %p66 = por %p64, %p65
      %s67 = ssub.s32 %s28, %s40
      %s68 = ssub.s32 %s29, %s36
      %s69 = sor.u32 %s67, %s68
      %p70 = scmp.eq.s32.totalorder %s69, 0
      %s72 = sadd.s32 %s71, 1
      %s73 = scalar_select %p70, %s71, %s72
      %p76 = pneg %p70
      %p77 = scmp.eq.s32.totalorder %s21, 1
      %p78 = por %p76, %p77
      %p79 = scmp.ne.s32.totalorder %s71, %s74
      %p80 = scmp.eq.s32.totalorder %s21, 0
      %p81 = por %p79, %p80
      %p82 = scmp.ne.s32.totalorder %s71, %s74
      %p83 = scmp.eq.s32.totalorder %s26, 1
      %p84 = por %p82, %p83
      %p85 = scmp.ne.s32.totalorder %s74, %s75
      %p86 = scmp.eq.s32.totalorder %s26, 0
      %p87 = por %p85, %p86
      %p88 = scmp.ne.s32.totalorder %s74, %s75
      %p89 = scmp.eq.s32.totalorder %s27, 1
      %p90 = por %p88, %p89
      %p92 = scmp.ne.s32.totalorder %s75, %s91
      %p93 = scmp.eq.s32.totalorder %s27, 0
      %p94 = por %p92, %p93
      %s95 = ssub.s32 %s28, %s40
      %s96 = ssub.s32 %s29, %s36
      %s97 = sor.u32 %s95, %s96
      %p98 = scmp.eq.s32.totalorder %s97, 0
      %s100 = sadd.s32 %s99, 1
      %s101 = scalar_select %p98, %s99, %s100
      %p104 = pneg %p98
      %p105 = scmp.eq.s32.totalorder %s21, 1
      %p106 = por %p104, %p105
      %p107 = scmp.ne.s32.totalorder %s99, %s102
      %p108 = scmp.eq.s32.totalorder %s21, 0
      %p109 = por %p107, %p108
      %p110 = scmp.ne.s32.totalorder %s99, %s102
      %p111 = scmp.eq.s32.totalorder %s26, 1
      %p112 = por %p110, %p111
      %p113 = scmp.ne.s32.totalorder %s102, %s103
      %p114 = scmp.eq.s32.totalorder %s26, 0
      %p115 = por %p113, %p114
      %p116 = scmp.ne.s32.totalorder %s102, %s103
      %p117 = scmp.eq.s32.totalorder %s27, 1
      %p118 = por %p116, %p117
      %p120 = scmp.ne.s32.totalorder %s103, %s119
      %p121 = scmp.eq.s32.totalorder %s27, 0
      %p122 = por %p120, %p121
      %s123 = ssub.s32 %s28, %s40
      %s124 = ssub.s32 %s29, %s36
      %s125 = sor.u32 %s123, %s124
      %p126 = scmp.eq.s32.totalorder %s125, 0
      %s128 = sadd.s32 %s127, 1
      %s129 = scalar_select %p126, %s127, %s128
      %p132 = pneg %p126
      %p133 = scmp.eq.s32.totalorder %s21, 1
      %p134 = por %p132, %p133
      %p135 = scmp.ne.s32.totalorder %s127, %s130
      %p136 = scmp.eq.s32.totalorder %s21, 0
      %p137 = por %p135, %p136
      %p138 = scmp.ne.s32.totalorder %s127, %s130
      %p139 = scmp.eq.s32.totalorder %s26, 1
      %p140 = por %p138, %p139
      %p141 = scmp.ne.s32.totalorder %s130, %s131
      %p142 = scmp.eq.s32.totalorder %s26, 0
      %p143 = por %p141, %p142
      %p144 = scmp.ne.s32.totalorder %s130, %s131
      %p145 = scmp.eq.s32.totalorder %s27, 1
      %p146 = por %p144, %p145
      %p148 = scmp.ne.s32.totalorder %s131, %s147
      %p149 = scmp.eq.s32.totalorder %s27, 0
      %p150 = por %p148, %p149
      %s151 = ssub.s32 %s28, %s40
      %p152 = scmp.eq.s32.totalorder %s151, 0
      %s154 = sadd.s32 %s153, 1
      %s155 = scalar_select %p152, %s153, %s154
      %p158 = pneg %p152
      %p159 = scmp.eq.s32.totalorder %s21, 1
      %p160 = por %p158, %p159
      %p161 = scmp.ne.s32.totalorder %s153, %s156
      %p162 = scmp.eq.s32.totalorder %s21, 0
      %p163 = por %p161, %p162
      %p164 = scmp.ne.s32.totalorder %s153, %s156
      %p165 = scmp.eq.s32.totalorder %s26, 1
      %p166 = por %p164, %p165
      %p167 = scmp.ne.s32.totalorder %s156, %s157
      %p168 = scmp.eq.s32.totalorder %s26, 0
      %p169 = por %p167, %p168
      %p170 = scmp.ne.s32.totalorder %s156, %s157
      %p171 = scmp.eq.s32.totalorder %s27, 1
      %p172 = por %p170, %p171
      %p174 = scmp.ne.s32.totalorder %s157, %s173
      %p175 = scmp.eq.s32.totalorder %s27, 0
      %p176 = por %p174, %p175
      %s178 = sadd.s32 %s177, 1
      %p181 = scmp.eq.s32.totalorder %s21, 1
      %p182 = scmp.ne.s32.totalorder %s177, %s179
      %p183 = scmp.eq.s32.totalorder %s21, 0
      %p184 = por %p182, %p183
      %p185 = scmp.ne.s32.totalorder %s177, %s179
      %p186 = scmp.eq.s32.totalorder %s26, 1
      %p187 = por %p185, %p186
      %p188 = scmp.ne.s32.totalorder %s179, %s180
      %p189 = scmp.eq.s32.totalorder %s26, 0
      %p190 = por %p188, %p189
      %p191 = scmp.ne.s32.totalorder %s179, %s180
      %p192 = scmp.eq.s32.totalorder %s27, 1
      %p193 = por %p191, %p192
      %p195 = scmp.ne.s32.totalorder %s180, %s194
      %p196 = scmp.eq.s32.totalorder %s27, 0
      %p197 = por %p195, %p196
      %s198 = ssub.s32 %s28, %s40
      %s199 = ssub.s32 %s29, %s36
      %s200 = sor.u32 %s198, %s199
      %p201 = scmp.eq.s32.totalorder %s200, 0
      %s203 = sadd.s32 %s202, 1
      %s204 = scalar_select %p201, %s202, %s203
      %p207 = pneg %p201
      %p208 = scmp.eq.s32.totalorder %s21, 1
      %p209 = por %p207, %p208
      %p210 = scmp.ne.s32.totalorder %s202, %s205
      %p211 = scmp.eq.s32.totalorder %s21, 0
      %p212 = por %p210, %p211
      %p213 = scmp.ne.s32.totalorder %s202, %s205
      %p214 = scmp.eq.s32.totalorder %s26, 1
      %p215 = por %p213, %p214
      %p216 = scmp.ne.s32.totalorder %s205, %s206
      %p217 = scmp.eq.s32.totalorder %s26, 0
      %p218 = por %p216, %p217
      %p219 = scmp.ne.s32.totalorder %s205, %s206
      %p220 = scmp.eq.s32.totalorder %s27, 1
      %p221 = por %p219, %p220
      %p223 = scmp.ne.s32.totalorder %s206, %s222
      %p224 = scmp.eq.s32.totalorder %s27, 0
      %p225 = por %p223, %p224
      %s226 = ssub.s32 %s28, %s40
      %s227 = ssub.s32 %s29, %s36
      %s228 = sor.u32 %s226, %s227
      %p229 = scmp.eq.s32.totalorder %s228, 0
      %s231 = sadd.s32 %s230, 1
      %s232 = scalar_select %p229, %s230, %s231
      %p235 = pneg %p229
      %p236 = scmp.eq.s32.totalorder %s21, 1
      %p237 = por %p235, %p236
      %p238 = scmp.ne.s32.totalorder %s230, %s233
      %p239 = scmp.eq.s32.totalorder %s21, 0
      %p240 = por %p238, %p239
      %p241 = scmp.ne.s32.totalorder %s230, %s233
      %p242 = scmp.eq.s32.totalorder %s26, 1
      %p243 = por %p241, %p242
      %p244 = scmp.ne.s32.totalorder %s233, %s234
      %p245 = scmp.eq.s32.totalorder %s26, 0
      %p246 = por %p244, %p245
      %p247 = scmp.ne.s32.totalorder %s233, %s234
      %p248 = scmp.eq.s32.totalorder %s27, 1
      %p249 = por %p247, %p248
      %p251 = scmp.ne.s32.totalorder %s234, %s250
      %p252 = scmp.eq.s32.totalorder %s27, 0
      %p253 = por %p251, %p252
      %s254 = ssub.s32 %s28, %s40
      %s255 = ssub.s32 %s29, %s36
      %s256 = sor.u32 %s254, %s255
      %p257 = scmp.eq.s32.totalorder %s256, 0
      %s259 = sadd.s32 %s258, 1
      %s260 = scalar_select %p257, %s258, %s259
      %p263 = pneg %p257
      %p264 = scmp.eq.s32.totalorder %s21, 1
      %p265 = por %p263, %p264
      %p266 = scmp.ne.s32.totalorder %s258, %s261
      %p267 = scmp.eq.s32.totalorder %s21, 0
      %p268 = por %p266, %p267
      %p269 = scmp.ne.s32.totalorder %s258, %s261
      %p270 = scmp.eq.s32.totalorder %s26, 1
      %p271 = por %p269, %p270
      %p272 = scmp.ne.s32.totalorder %s261, %s262
      %p273 = scmp.eq.s32.totalorder %s26, 0
      %p274 = por %p272, %p273
      %p275 = scmp.ne.s32.totalorder %s261, %s262
      %p276 = scmp.eq.s32.totalorder %s27, 1
      %p277 = por %p275, %p276
      %p279 = scmp.ne.s32.totalorder %s262, %s278
      %p280 = scmp.eq.s32.totalorder %s27, 0
      %p281 = por %p279, %p280
      %p282 = scmp.le.s32.totalorder 1, %s21
      %p283 = scmp.lt.s32.totalorder %s21, 3
      %p284 = pnand %p282, %p283
      %p285 = pneg %p284
      // Predicated region
      $region9: #{svc_encoder_forward.1} parent=5 // pred_check
        _
      $region10: #{svc_encoder_forward.1} parent=5 // pred_check_branch
        %287 = sbr.rel (%p284) target = $region12
      $region11: #{svc_encoder_forward.1} parent=5 // pred_region
        %s288 = ssub.s32 %s21, 1
        // Predicated region
        $region13: #{svc_encoder_forward.1} parent=11 // pred_check
          %p289 = pneg %p190
        $region14: #{svc_encoder_forward.1} parent=11 // pred_check_branch
          %291 = sbr.rel (%p289) target = $region16
        $region15: #{svc_encoder_forward.1} parent=11 // pred_region
          _
        $region16: #{svc_encoder_forward.1} parent=11 // pred_fallthru
          _
      $region12: #{svc_encoder_forward.1} parent=5 // pred_fallthru
        _
      %p292 = scmp.lt.s32.totalorder %s21, 2
      // Predicated region
      $region17: #{svc_encoder_forward.1} parent=5 // pred_check
        %p293 = pneg %p292
      $region18: #{svc_encoder_forward.1} parent=5 // pred_check_branch
        %295 = sbr.rel (%p293) target = $region20
      $region19: #{svc_encoder_forward.1} parent=5 // pred_region
        // Predicated region
        $region21: #{svc_encoder_forward.1} parent=19 // pred_check
          %p296 = pneg %p53
        $region22: #{svc_encoder_forward.1} parent=19 // pred_check_branch
          %298 = sbr.rel (%p296) target = $region24
        $region23: #{svc_encoder_forward.1} parent=19 // pred_region
          %p299 = scmp.lt.s32.totalorder %s28, 1
          %s300 = scalar_select %p299, %s28, 1
          %s301 = smul.addr %s300, 8
          %s302 = scalar_lea.vmem %s0, %s301
        $region24: #{svc_encoder_forward.1} parent=19 // pred_fallthru
          _
        // Predicated region
        $region25: #{svc_encoder_forward.1} parent=19 // pred_check
          %p303 = pneg %p81
        $region26: #{svc_encoder_forward.1} parent=19 // pred_check_branch
          %305 = sbr.rel (%p303) target = $region28
        $region27: #{svc_encoder_forward.1} parent=19 // pred_region
          %p306 = scmp.lt.s32.totalorder %s28, 1
          %s307 = scalar_select %p306, %s28, 1
          %p308 = scmp.lt.s32.totalorder %s29, 0
          %s309 = scalar_select %p308, %s29, 0
          %s310 = sadd.s32 %s309, %s307
          %s311 = scalar_lea.vmem %s1, %s310
        $region28: #{svc_encoder_forward.1} parent=19 // pred_fallthru
          _
        // Predicated region
        $region29: #{svc_encoder_forward.1} parent=19 // pred_check
          %p312 = pneg %p109
        $region30: #{svc_encoder_forward.1} parent=19 // pred_check_branch
          %314 = sbr.rel (%p312) target = $region32
        $region31: #{svc_encoder_forward.1} parent=19 // pred_region
          %p315 = scmp.lt.s32.totalorder %s28, 1
          %s316 = scalar_select %p315, %s28, 1
          %p317 = scmp.lt.s32.totalorder %s29, 0
          %s318 = scalar_select %p317, %s29, 0
          %s319 = sadd.s32 %s318, %s316
          %s320 = scalar_lea.vmem %s2, %s319
        $region32: #{svc_encoder_forward.1} parent=19 // pred_fallthru
          _
        // Predicated region
        $region33: #{svc_encoder_forward.1} parent=19 // pred_check
          %p321 = pneg %p137
        $region34: #{svc_encoder_forward.1} parent=19 // pred_check_branch
          %323 = sbr.rel (%p321) target = $region36
        $region35: #{svc_encoder_forward.1} parent=19 // pred_region
          %p324 = scmp.lt.s32.totalorder %s28, 1
          %s325 = scalar_select %p324, %s28, 1
          %p326 = scmp.lt.s32.totalorder %s29, 0
          %s327 = scalar_select %p326, %s29, 0
          %s328 = sadd.s32 %s327, %s325
          %s329 = scalar_lea.vmem %s3, %s328
        $region36: #{svc_encoder_forward.1} parent=19 // pred_fallthru
          _
        // Predicated region
        $region37: #{svc_encoder_forward.1} parent=19 // pred_check
          %p330 = pneg %p163
        $region38: #{svc_encoder_forward.1} parent=19 // pred_check_branch
          %332 = sbr.rel (%p330) target = $region40
        $region39: #{svc_encoder_forward.1} parent=19 // pred_region
          %p333 = scmp.lt.s32.totalorder %s28, 1
          %s334 = scalar_select %p333, %s28, 1
          %s335 = scalar_lea.vmem %s4, %s334
        $region40: #{svc_encoder_forward.1} parent=19 // pred_fallthru
          _
      $region20: #{svc_encoder_forward.1} parent=5 // pred_fallthru
        _
      %p336 = scmp.le.s32.totalorder 1, %s21
      %p337 = scmp.lt.s32.totalorder %s21, 3
      %p338 = pnand %p336, %p337
      %p339 = pneg %p338
      // Predicated region
      $region41: #{svc_encoder_forward.1} parent=5 // pred_check
        _
      $region42: #{svc_encoder_forward.1} parent=5 // pred_check_branch
        %341 = sbr.rel (%p338) target = $region44
      $region43: #{svc_encoder_forward.1} parent=5 // pred_region
        %s342 = ssub.s32 %s21, 1
        %p343 = scmp.lt.s32.totalorder %s30, 1
        %s344 = scalar_select %p343, %s30, 1
        %s345 = smul.addr %s344, 8
        %s346 = scalar_lea.vmem %s0, %s345
        %p347 = pneg %p59
        %p348 = pneg %p56
        %p349 = scmp.lt.s32.totalorder %s30, 1
        %s350 = scalar_select %p349, %s30, 1
        %p351 = scmp.lt.s32.totalorder %s31, 0
        %s352 = scalar_select %p351, %s31, 0
        %s353 = sadd.s32 %s352, %s350
        %s354 = scalar_lea.vmem %s1, %s353
        %p355 = pneg %p87
        %p356 = pneg %p84
        %p357 = scmp.lt.s32.totalorder %s30, 1
        %s358 = scalar_select %p357, %s30, 1
        %p359 = scmp.lt.s32.totalorder %s31, 0
        %s360 = scalar_select %p359, %s31, 0
        %s361 = sadd.s32 %s360, %s358
        %s362 = scalar_lea.vmem %s2, %s361
        %p363 = pneg %p115
        %p364 = pneg %p112
        %p365 = scmp.lt.s32.totalorder %s30, 1
        %s366 = scalar_select %p365, %s30, 1
        %p367 = scmp.lt.s32.totalorder %s31, 0
        %s368 = scalar_select %p367, %s31, 0
        %s369 = sadd.s32 %s368, %s366
        %s370 = scalar_lea.vmem %s3, %s369
        %p371 = pneg %p143
        %p372 = pneg %p140
        %p373 = scmp.lt.s32.totalorder %s30, 1
        %s374 = scalar_select %p373, %s30, 1
        %s375 = scalar_lea.vmem %s4, %s374
        %p376 = pneg %p169
        %p377 = pneg %p166
        %p378 = pneg %p190
        %p379 = pneg %p187
        %p380 = pneg %p218
        %p381 = pneg %p215
        %s382 = sand.u32 %s205, 1
        %s383 = scalar_lea.sflag [#allocation3], %s382
        %s384 = sand.u32 %s205, 1
        %s385 = smul.addr %s384, 16
        %s386 = scalar_lea.vmem [#allocation2], %s385
        %p387 = pneg %p246
        %p388 = pneg %p243
        %s389 = sand.u32 %s26, 1
        %s390 = scalar_lea.sflag [#allocation5], %s389
        %s391 = sand.u32 %s233, 1
        %s392 = scalar_lea.vmem [#allocation4], %s391
        %p393 = pneg %p274
        %p394 = pneg %p271
        %s395 = sand.u32 %s26, 1
        %s396 = scalar_lea.sflag [#allocation5], %s395
        %s397 = sand.u32 %s261, 1
        %s398 = scalar_lea.vmem [#allocation6], %s397
        %p399 = scmp.lt.s32.totalorder %s30, 1
        %s400 = scalar_select %p399, %s30, 1
        %s401 = smul.addr %s400, 8
        %s402 = scalar_lea.vmem %s0, %s401
        %p403 = scmp.lt.s32.totalorder %s30, 1
        %s404 = scalar_select %p403, %s30, 1
        %p405 = scmp.lt.s32.totalorder %s31, 0
        %s406 = scalar_select %p405, %s31, 0
        %s407 = sadd.s32 %s406, %s404
        %s408 = scalar_lea.vmem %s1, %s407
        %p409 = scmp.lt.s32.totalorder %s30, 1
        %s410 = scalar_select %p409, %s30, 1
        %p411 = scmp.lt.s32.totalorder %s31, 0
        %s412 = scalar_select %p411, %s31, 0
        %s413 = sadd.s32 %s412, %s410
        %s414 = scalar_lea.vmem %s2, %s413
        %p415 = scmp.lt.s32.totalorder %s30, 1
        %s416 = scalar_select %p415, %s30, 1
        %p417 = scmp.lt.s32.totalorder %s31, 0
        %s418 = scalar_select %p417, %s31, 0
        %s419 = sadd.s32 %s418, %s416
        %s420 = scalar_lea.vmem %s3, %s419
        %p421 = scmp.lt.s32.totalorder %s30, 1
        %s422 = scalar_select %p421, %s30, 1
        %s423 = scalar_lea.vmem %s4, %s422
        %s424 = smul.u32 2, %s31
        %v425 = vld [vmem:[%s408] sm:$0x1]
        %v426 = vld [vmem:[%s414] sm:$0x1]
        %v427 = vld [vmem:[%s420] sm:$0x1]
        %vm428 = vcmp.le.f32.partialorder %v427, 0.0
        %vm429 = vcmp.gt.s32.totalorder %v425, 0
        %vm430 = vmand %vm428, %vm429
        %v431 = vmul.f32 %v426, 0.6931472
        %v432 = vmul.f32 %v431, 1.442695
        %v433 = vpow.pop %v432
        %v434 = vsel %vm430, %v433, 0.0
        %vm435 = vcmask 122880
        %436 = vst.msk [vmem:[%s392] sm:$0x1] %vm435, %v434
        %v437 = vrcp.pop 700.0
        %v438 = vmul.f32 %v434, %v437
        %v439 = vadd.f32 %v438, 1.0
        %v440 = vlog2.pop %v439
        %v441 = vmul.f32 %v440, 0.6931472
        %v442 = vmul.f32 %v441, 1127.0
        %vm443 = vcmp.gt.f32.partialorder %v442, 0.0
        %v444 = vsub.f32 %v442, 77.75497
        %v445 = vmul.f32 %v444, 0.25743592
        %v446 = vadd.f32 %v445, 1.0
        %v447 = vsel %vm443, %v446, %v442
        %v448 = vmax.f32 %v447, 1.0
        %v449 = vmin.f32 %v448, 255.0
        %v450 = vadd.f32 %v449, 0.5
        %v451 = vfloor.f32 %v450
        %v452 = vcvt.f32.s32.to.zero.pseudo %v451
        %453 = vst.msk [vmem:[%s398] sm:$0x1] %vm435, %v452
        %454 = vxpose.xlu0.b32.start [1/16] %v425, 128
        %455 = vxpose.xlu0.b32.cont [2/16] 0, 128
        %456 = vxpose.xlu0.b32.cont [3/16] 0, 128
        %457 = vxpose.xlu0.b32.cont [4/16] 0, 128
        %458 = vxpose.xlu0.b32.cont [5/16] 0, 128
        %459 = vxpose.xlu0.b32.cont [6/16] 0, 128
        %460 = vxpose.xlu0.b32.cont [7/16] 0, 128
        %461 = vxpose.xlu0.b32.cont [8/16] 0, 128
        %462 = vxpose.xlu0.b32.cont [9/16] 0, 128
        %463 = vxpose.xlu0.b32.cont [10/16] 0, 128
        %464 = vxpose.xlu0.b32.cont [11/16] 0, 128
        %465 = vxpose.xlu0.b32.cont [12/16] 0, 128
        %466 = vxpose.xlu0.b32.cont [13/16] 0, 128
        %467 = vxpose.xlu0.b32.cont [14/16] 0, 128
        %468 = vxpose.xlu0.b32.cont [15/16] 0, 128
        %469 = vxpose.xlu0.b32.end [16/16] 0, 128
        %v470 = vpop.trf.xlu0
        %v471 = vpop.trf.xlu0
        %v472 = vpop.trf.xlu0
        %v473 = vpop.trf.xlu0
        %v474 = vpop.trf.xlu0
        %v475 = vpop.trf.xlu0
        %v476 = vpop.trf.xlu0
        %v477 = vpop.trf.xlu0
        %v478 = vpop.trf.xlu0
        %v479 = vpop.trf.xlu0
        %v480 = vpop.trf.xlu0
        %v481 = vpop.trf.xlu0
        %v482 = vpop.trf.xlu0
        %v483 = vpop.trf.xlu0
        %v484 = vpop.trf.xlu0
        %v485 = vpop.trf.xlu0
        %486 = vxpose.xlu0.b32.start [1/16] %v452, 128
        %487 = vxpose.xlu0.b32.cont [2/16] 0, 128
        %488 = vxpose.xlu0.b32.cont [3/16] 0, 128
        %489 = vxpose.xlu0.b32.cont [4/16] 0, 128
        %490 = vxpose.xlu0.b32.cont [5/16] 0, 128
        %491 = vxpose.xlu0.b32.cont [6/16] 0, 128
        %492 = vxpose.xlu0.b32.cont [7/16] 0, 128
        %493 = vxpose.xlu0.b32.cont [8/16] 0, 128
        %494 = vxpose.xlu0.b32.cont [9/16] 0, 128
        %495 = vxpose.xlu0.b32.cont [10/16] 0, 128
        %496 = vxpose.xlu0.b32.cont [11/16] 0, 128
        %497 = vxpose.xlu0.b32.cont [12/16] 0, 128
        %498 = vxpose.xlu0.b32.cont [13/16] 0, 128
        %499 = vxpose.xlu0.b32.cont [14/16] 0, 128
        %500 = vxpose.xlu0.b32.cont [15/16] 0, 128
        %501 = vxpose.xlu0.b32.end [16/16] 0, 128
        %v502 = vpop.trf.xlu0
        %v503 = vpop.trf.xlu0
        %v504 = vpop.trf.xlu0
        %v505 = vpop.trf.xlu0
        %v506 = vpop.trf.xlu0
        %v507 = vpop.trf.xlu0
        %v508 = vpop.trf.xlu0
        %v509 = vpop.trf.xlu0
        %v510 = vpop.trf.xlu0
        %v511 = vpop.trf.xlu0
        %v512 = vpop.trf.xlu0
        %v513 = vpop.trf.xlu0
        %v514 = vpop.trf.xlu0
        %v515 = vpop.trf.xlu0
        %v516 = vpop.trf.xlu0
        %v517 = vpop.trf.xlu0
        %v518 = vld [vmem:[%s402] sm:$0xff]
        %v519 = vlaneseq
        %v520 = vand.u32 %v519, 127
        %v521 = vsub.s32 %v470, 1
        %v522 = vsub.s32 %v471, 1
        %523 = vset.pattern.permute.xlu0 0
        %524 = vperm.xlu0 %523, %v521
        %v525 = vpop.permute.xlu0 %524
        %526 = vset.pattern.permute.xlu0 0
        %527 = vperm.xlu0 %526, %v522
        %v528 = vpop.permute.xlu0 %527
        %vm529 = vcmp.eq.s32.totalorder %v520, %v525
        %vm530 = vcmp.eq.s32.totalorder %v520, %v528
        %v531 = vsel %vm529, 1, 0
        %v532 = vsel %vm530, 1, 0
        %v533 = vcvt.s32.f32 %v531
        %v534 = vcvt.s32.f32 %v532
        %v535 = vadd.s32 %v520, 128
        %536 = vset.pattern.permute.xlu0 0
        %537 = vperm.xlu0 %536, %v502
        %v538 = vpop.permute.xlu0 %537
        %539 = vset.pattern.permute.xlu0 0
        %540 = vperm.xlu0 %539, %v503
        %v541 = vpop.permute.xlu0 %540
        %vm542 = vcmp.eq.s32.totalorder %v520, %v538
        %vm543 = vcmp.eq.s32.totalorder %v535, %v538
        %vm544 = vcmp.eq.s32.totalorder %v520, %v541
        %vm545 = vcmp.eq.s32.totalorder %v535, %v541
        %v546 = vsel %vm542, 1, 0
        %v547 = vsel %vm543, 1, 0
        %v548 = vsel %vm544, 1, 0
        %v549 = vsel %vm545, 1, 0
        %v550 = vcvt.s32.f32 %v546
        %v551 = vcvt.s32.f32 %v547
        %v552 = vcvt.s32.f32 %v548
        %v553 = vcvt.s32.f32 %v549
        %v554 = vld [vmem:[%s5] sm:$0xff]
        %v555 = vld [vmem:[%s5 + $0x8] sm:$0xff]
        %v556 = vld [vmem:[%s5 + $0x10] sm:$0xff]
        %v557 = vld [vmem:[%s5 + $0x18] sm:$0xff]
        %v558 = vld [vmem:[%s5 + $0x20] sm:$0xff]
        %v559 = vld [vmem:[%s5 + $0x28] sm:$0xff]
        %v560 = vld [vmem:[%s5 + $0x30] sm:$0xff]
        %v561 = vld [vmem:[%s5 + $0x38] sm:$0xff]
        %v562 = vld [vmem:[%s5 + $0x40] sm:$0xff]
        %v563 = vld [vmem:[%s5 + $0x48] sm:$0xff]
        %v564 = vld [vmem:[%s5 + $0x50] sm:$0xff]
        %v565 = vld [vmem:[%s5 + $0x58] sm:$0xff]
        %v566 = vld [vmem:[%s5 + $0x60] sm:$0xff]
        %v567 = vld [vmem:[%s5 + $0x68] sm:$0xff]
        %v568 = vld [vmem:[%s5 + $0x70] sm:$0xff]
        %v569 = vld [vmem:[%s5 + $0x78] sm:$0xff]
        %v570 = vld [vmem:[%s5 + $0x80] sm:$0xff]
        %v571 = vld [vmem:[%s5 + $0x88] sm:$0xff]
        %v572 = vld [vmem:[%s5 + $0x90] sm:$0xff]
        %v573 = vld [vmem:[%s5 + $0x98] sm:$0xff]
        %v574 = vld [vmem:[%s5 + $0xa0] sm:$0xff]
        %v575 = vld [vmem:[%s5 + $0xa8] sm:$0xff]
        %v576 = vld [vmem:[%s5 + $0xb0] sm:$0xff]
        %v577 = vld [vmem:[%s5 + $0xb8] sm:$0xff]
        %v578 = vld [vmem:[%s5 + $0xc0] sm:$0xff]
        %v579 = vld [vmem:[%s5 + $0xc8] sm:$0xff]
        %v580 = vld [vmem:[%s5 + $0xd0] sm:$0xff]
        %v581 = vld [vmem:[%s5 + $0xd8] sm:$0xff]
        %v582 = vld [vmem:[%s5 + $0xe0] sm:$0xff]
        %v583 = vld [vmem:[%s5 + $0xe8] sm:$0xff]
        %v584 = vld [vmem:[%s5 + $0xf0] sm:$0xff]
        %v585 = vld [vmem:[%s5 + $0xf8] sm:$0xff]
        %586 = vmatprep.subr.mxu0 0.0
        %587 = vmatpush1.msra.mxu0 %v554
        %588 = vmatprep.subr.mxu0 0.0
        %589 = vmatpush1.msra.mxu0 %v555
        %590 = vmatprep.subr.mxu0 0.0
        %591 = vmatpush1.msra.mxu0 %v556
        %592 = vmatprep.subr.mxu0 0.0
        %593 = vmatpush1.msra.mxu0 %v557
        %594 = vmatprep.subr.mxu0 0.0
        %595 = vmatpush1.msra.mxu0 %v558
        %596 = vmatprep.subr.mxu0 0.0
        %597 = vmatpush1.msra.mxu0 %v559
        %598 = vmatprep.subr.mxu0 0.0
        %599 = vmatpush1.msra.mxu0 %v560
        %600 = vmatprep.subr.mxu0 0.0
        %601 = vmatpush1.msra.mxu0 %v561
        %602 = vmatprep.subr.mxu0 0.0
        %603 = vmatpush1.msra.mxu0 %v562
        %604 = vmatprep.subr.mxu0 0.0
        %605 = vmatpush1.msra.mxu0 %v563
        %606 = vmatprep.subr.mxu0 0.0
        %607 = vmatpush1.msra.mxu0 %v564
        %608 = vmatprep.subr.mxu0 0.0
        %609 = vmatpush1.msra.mxu0 %v565
        %610 = vmatprep.subr.mxu0 0.0
        %611 = vmatpush1.msra.mxu0 %v566
        %612 = vmatprep.subr.mxu0 0.0
        %613 = vmatpush1.msra.mxu0 %v567
        %614 = vmatprep.subr.mxu0 0.0
        %615 = vmatpush1.msra.mxu0 %v568
        %616 = vmatprep.subr.mxu0 0.0
        %617 = vmatpush1.msra.mxu0 %v569
        %618 = vmatprep.subr.mxu0 0.0
        %619 = vmatpush1.msra.mxu0 %v570
        %620 = vmatprep.subr.mxu0 0.0
        %621 = vmatpush1.msra.mxu0 %v571
        %622 = vmatprep.subr.mxu0 0.0
        %623 = vmatpush1.msra.mxu0 %v572
        %624 = vmatprep.subr.mxu0 0.0
        %625 = vmatpush1.msra.mxu0 %v573
        %626 = vmatprep.subr.mxu0 0.0
        %627 = vmatpush1.msra.mxu0 %v574
        %628 = vmatprep.subr.mxu0 0.0
        %629 = vmatpush1.msra.mxu0 %v575
        %630 = vmatprep.subr.mxu0 0.0
        %631 = vmatpush1.msra.mxu0 %v576
        %632 = vmatprep.subr.mxu0 0.0
        %633 = vmatpush1.msra.mxu0 %v577
        %634 = vmatprep.subr.mxu0 0.0
        %635 = vmatpush1.msra.mxu0 %v578
        %636 = vmatprep.subr.mxu0 0.0
        %637 = vmatpush1.msra.mxu0 %v579
        %638 = vmatprep.subr.mxu0 0.0
        %639 = vmatpush1.msra.mxu0 %v580
        %640 = vmatprep.subr.mxu0 0.0
        %641 = vmatpush1.msra.mxu0 %v581
        %642 = vmatprep.subr.mxu0 0.0
        %643 = vmatpush1.msra.mxu0 %v582
        %644 = vmatprep.subr.mxu0 0.0
        %645 = vmatpush1.msra.mxu0 %v583
        %646 = vmatprep.subr.mxu0 0.0
        %647 = vmatpush1.msra.mxu0 %v584
        %648 = vmatprep.subr.mxu0 0.0
        %649 = vmatpush1.msra.mxu0 %v585
        %650 = vmatprep.mubr.f32.mxu0 %v551
        %651 = vmatmul.mubr.f32.gmra.mrb[0].mxu0 %v550
        %v652 = vpop.f32.mrb[0].mxu0
        %v653 = vadd.f32 0.0, %v652
        %v654 = vpop.f32.mrb[0].mxu0
        %655 = vmatprep.mubr.f32.mxu0 %v553
        %656 = vmatmul.mubr.f32.gmra.mrb[0].mxu0 %v552
        %v657 = vpop.f32.mrb[0].mxu0
        %v658 = vadd.f32 0.0, %v657
        %v659 = vpop.f32.mrb[0].mxu0
        %660 = vdwg.mxu0
        %vm661 = vcmp.gt.s32.totalorder %v470, 0
        %vm662 = vcmp.gt.s32.totalorder %v471, 0
        %v663 = vsel %vm661, 1, 0
        %v664 = vsel %vm662, 1, 0
        %v665 = vcvt.s32.f32 %v663
        %v666 = vcvt.s32.f32 %v664
        %v667 = vld [vmem:[%s423] sm:$0x1]
        %vm668 = vcmask 64512
        %v670 = vsel %vm668, %v533, 0
        %v673 = vsel %vm668, %v534, 0
        %675 = vmatprep.subr.mxu0 0.0
        %676 = vmatpush1.msra.mxu0 %v518
        %677 = vmatprep.subr.mxu0 0.0
        %678 = vmatpush1.msra.mxu0 0.0
        %679 = vmatprep.subr.mxu0 0.0
        %680 = vmatpush1.msra.mxu0 0.0
        %681 = vmatprep.subr.mxu0 0.0
        %682 = vmatpush1.msra.mxu0 0.0
        %683 = vmatprep.subr.mxu0 0.0
        %684 = vmatpush1.msra.mxu0 0.0
        %685 = vmatprep.subr.mxu0 0.0
        %686 = vmatpush1.msra.mxu0 0.0
        %687 = vmatprep.subr.mxu0 0.0
        %688 = vmatpush1.msra.mxu0 0.0
        %689 = vmatprep.subr.mxu0 0.0
        %690 = vmatpush1.msra.mxu0 0.0
        %691 = vmatprep.subr.mxu0 0.0
        %692 = vmatpush1.msra.mxu0 0.0
        %693 = vmatprep.subr.mxu0 0.0
        %694 = vmatpush1.msra.mxu0 0.0
        %695 = vmatprep.subr.mxu0 0.0
        %696 = vmatpush1.msra.mxu0 0.0
        %697 = vmatprep.subr.mxu0 0.0
        %698 = vmatpush1.msra.mxu0 0.0
        %699 = vmatprep.subr.mxu0 0.0
        %700 = vmatpush1.msra.mxu0 0.0
        %701 = vmatprep.subr.mxu0 0.0
        %702 = vmatpush1.msra.mxu0 0.0
        %703 = vmatprep.subr.mxu0 0.0
        %704 = vmatpush1.msra.mxu0 0.0
        %705 = vmatprep.subr.mxu0 0.0
        %706 = vmatpush1.msra.mxu0 0.0
        %707 = vmatprep.subr.mxu0 0.0
        %708 = vmatpush1.msra.mxu0 0.0
        %709 = vmatprep.subr.mxu0 0.0
        %710 = vmatpush1.msra.mxu0 0.0
        %711 = vmatprep.subr.mxu0 0.0
        %712 = vmatpush1.msra.mxu0 0.0
        %713 = vmatprep.subr.mxu0 0.0
        %714 = vmatpush1.msra.mxu0 0.0
        %715 = vmatprep.subr.mxu0 0.0
        %716 = vmatpush1.msra.mxu0 0.0
        %717 = vmatprep.subr.mxu0 0.0
        %718 = vmatpush1.msra.mxu0 0.0
        %719 = vmatprep.subr.mxu0 0.0
        %720 = vmatpush1.msra.mxu0 0.0
        %721 = vmatprep.subr.mxu0 0.0
        %722 = vmatpush1.msra.mxu0 0.0
        %723 = vmatprep.subr.mxu0 0.0
        %724 = vmatpush1.msra.mxu0 0.0
        %725 = vmatprep.subr.mxu0 0.0
        %726 = vmatpush1.msra.mxu0 0.0
        %727 = vmatprep.subr.mxu0 0.0
        %728 = vmatpush1.msra.mxu0 0.0
        %729 = vmatprep.subr.mxu0 0.0
        %730 = vmatpush1.msra.mxu0 0.0
        %731 = vmatprep.subr.mxu0 0.0
        %732 = vmatpush1.msra.mxu0 0.0
        %733 = vmatprep.subr.mxu0 0.0
        %734 = vmatpush1.msra.mxu0 0.0
        %735 = vmatprep.subr.mxu0 0.0
        %736 = vmatpush1.msra.mxu0 0.0
        %737 = vmatprep.subr.mxu0 0.0
        %738 = vmatpush1.msra.mxu0 0.0
        %739 = vmatprep.mubr.f32.mxu0 0.0
        %740 = vmatmul.mubr.f32.gmra.mrb[0].mxu0 %v670
        %v741 = vpop.f32.mrb[0].mxu0
        %v742 = vadd.f32 %v653, %v741
        %v743 = vpop.f32.mrb[0].mxu0
        %744 = vmatprep.mubr.f32.mxu0 0.0
        %745 = vmatmul.mubr.f32.gmra.mrb[0].mxu0 %v673
        %v746 = vpop.f32.mrb[0].mxu0
        %v747 = vadd.f32 %v658, %v746
        %v748 = vpop.f32.mrb[0].mxu0
        %749 = vdwg.mxu0
        %v751 = vlaneseq
        %v752 = vshrl.u32 %v751, 7
        %v753 = vsub.s32 0, %v752
        %v754 = vrot.slane %v667, %v753
        %v756 = vadd.f32 %v742, %v754
        %v757 = vadd.f32 %v747, %v754
        %759 = vset.pattern.permute.xlu0 0
        %760 = vperm.xlu0 %759, %v665
        %v761 = vpop.permute.xlu0 %760
        %764 = vset.pattern.permute.xlu0 0
        %765 = vperm.xlu0 %764, %v666
        %v766 = vpop.permute.xlu0 %765
        %v768 = vmul.f32 %v756, %v761
        %v769 = vmul.f32 %v757, %v766
        %770 = vst [vmem:[%s386] sm:$0xff] %v768
        %771 = vst [vmem:[%s386 + $0x8] sm:$0xff] %v769
        %s772 = sand.u32 %s205, 1
        %s773 = scalar_lea.sflag [#allocation3], %s772
        %s774 = sand.u32 %s205, 1
        %s775 = smul.addr %s774, 16
        %s776 = scalar_lea.vmem [#allocation2], %s775
        %s777 = sand.u32 %s26, 1
        %s778 = scalar_lea.sflag [#allocation5], %s777
        %s779 = sand.u32 %s233, 1
        %s780 = scalar_lea.vmem [#allocation4], %s779
        %s781 = sand.u32 %s26, 1
        %s782 = scalar_lea.sflag [#allocation5], %s781
        %s783 = sand.u32 %s261, 1
        %s784 = scalar_lea.vmem [#allocation6], %s783
        // Predicated region
        $region45: #{svc_encoder_forward.1} parent=43 // pred_check
          %p785 = pneg %p215
        $region46: #{svc_encoder_forward.1} parent=43 // pred_check_branch
          %787 = sbr.rel (%p785) target = $region48
        $region47: #{svc_encoder_forward.1} parent=43 // pred_region
          %s788 = smul.u32 2, %s31
          %s790 = ssub.s32 256, 256
          %791 = vsyncadd %s773, %s790
          %s792 = smul.addr %s30, 2
          %s793 = sadd.s32 %s788, %s792
          %s794 = smul.addr %s793, 128
          %s795 = scalar_lea.hbm %s6, %s794
          %s796 = sshll.u32 %s776, 4
          %s797 = int_to_ptr.vmem [resolvable:$true] %s796
          %802 = dma.vmem_to_hbm [thread:$0]  %s797, 256, %s795, %s773, 128, 128, 8
        $region48: #{svc_encoder_forward.1} parent=43 // pred_fallthru
          _
        // Predicated region
        $region49: #{svc_encoder_forward.1} parent=43 // pred_check
          %p803 = pneg %p243
        $region50: #{svc_encoder_forward.1} parent=43 // pred_check_branch
          %805 = sbr.rel (%p803) target = $region52
        $region51: #{svc_encoder_forward.1} parent=43 // pred_region
          %s807 = ssub.s32 16, 16
          %808 = vsyncadd %s778, %s807
          %s809 = sadd.s32 %s31, %s30
          %s810 = smul.addr %s809, 16
          %s811 = scalar_lea.hbm %s7, %s810
          %s813 = sshll.u32 %s780, 4
          %s814 = int_to_ptr.vmem [resolvable:$true] %s813
          %816 = dma.vmem_to_hbm [thread:$0]  %s814, 16, %s811, %s778
        $region52: #{svc_encoder_forward.1} parent=43 // pred_fallthru
          _
        // Predicated region
        $region53: #{svc_encoder_forward.1} parent=43 // pred_check
          %p817 = pneg %p271
        $region54: #{svc_encoder_forward.1} parent=43 // pred_check_branch
          %819 = sbr.rel (%p817) target = $region56
        $region55: #{svc_encoder_forward.1} parent=43 // pred_region
          %s821 = ssub.s32 16, 16
          %822 = vsyncadd %s782, %s821
          %s823 = sadd.s32 %s31, %s30
          %s824 = smul.addr %s823, 16
          %s825 = scalar_lea.hbm %s8, %s824
          %s827 = sshll.u32 %s784, 4
          %s828 = int_to_ptr.vmem [resolvable:$true] %s827
          %830 = dma.vmem_to_hbm [thread:$0]  %s828, 16, %s825, %s782
        $region56: #{svc_encoder_forward.1} parent=43 // pred_fallthru
          _
      $region44: #{svc_encoder_forward.1} parent=5 // pred_fallthru
        _
      %p831 = scmp.le.s32.totalorder 2, %s21
      // Predicated region
      $region57: #{svc_encoder_forward.1} parent=5 // pred_check
        %p832 = pneg %p831
      $region58: #{svc_encoder_forward.1} parent=5 // pred_check_branch
        %834 = sbr.rel (%p832) target = $region60
      $region59: #{svc_encoder_forward.1} parent=5 // pred_region
        %s835 = ssub.s32 %s21, 2
        // Predicated region
        $region61: #{svc_encoder_forward.1} parent=59 // pred_check
          %p836 = pneg %p221
        $region62: #{svc_encoder_forward.1} parent=59 // pred_check_branch
          %838 = sbr.rel (%p836) target = $region64
        $region63: #{svc_encoder_forward.1} parent=59 // pred_region
          %s839 = sand.u32 %s206, 1
          %s840 = scalar_lea.sflag [#allocation3], %s839
          %s841 = sand.u32 %s206, 1
          %s842 = smul.addr %s841, 16
          %s843 = scalar_lea.vmem [#allocation2], %s842
          %844 = dma.done %s840, 256
        $region64: #{svc_encoder_forward.1} parent=59 // pred_fallthru
          _
        // Predicated region
        $region65: #{svc_encoder_forward.1} parent=59 // pred_check
          %p845 = pneg %p249
        $region66: #{svc_encoder_forward.1} parent=59 // pred_check_branch
          %847 = sbr.rel (%p845) target = $region68
        $region67: #{svc_encoder_forward.1} parent=59 // pred_region
          %s848 = sand.u32 %s27, 1
          %s849 = scalar_lea.sflag [#allocation5], %s848
          %s850 = sand.u32 %s234, 1
          %s851 = scalar_lea.vmem [#allocation4], %s850
          %852 = dma.done %s849, 16
        $region68: #{svc_encoder_forward.1} parent=59 // pred_fallthru
          _
        // Predicated region
        $region69: #{svc_encoder_forward.1} parent=59 // pred_check
          %p853 = pneg %p277
        $region70: #{svc_encoder_forward.1} parent=59 // pred_check_branch
          %855 = sbr.rel (%p853) target = $region72
        $region71: #{svc_encoder_forward.1} parent=59 // pred_region
          %s856 = sand.u32 %s27, 1
          %s857 = scalar_lea.sflag [#allocation5], %s856
          %s858 = sand.u32 %s262, 1
          %s859 = scalar_lea.vmem [#allocation6], %s858
          %860 = dma.done %s857, 16
        $region72: #{svc_encoder_forward.1} parent=59 // pred_fallthru
          _
      $region60: #{svc_encoder_forward.1} parent=5 // pred_fallthru
        _
    $region6: #{svc_encoder_forward.1} parent=1 // loop_footer
      %s25 = sadd.s32 1, %s21
    $region7: #{svc_encoder_forward.1} parent=1 // loop_footer_branch
      %20 = sbr.rel target = $region3
    $region8: #{svc_encoder_forward.1} parent=1 // loop_exit
      _
    %861 = vsyncpa [#allocation3], 1
    %s862 = scalar_lea.sflag [#allocation3], 1
    %863 = vsyncpa %s862, 1
    %864 = vsyncpa [#allocation5], 1
    %s865 = scalar_lea.sflag [#allocation5], 1
    %866 = vsyncpa %s865, 1

</llo_original>
